<compile_context>
chip_gen: v7x
topology: tpu7x:2x2x1
jax: 0.10.0
libtpu: 0.0.40
codegen_flags: <defaults>
</compile_context>

<pallas_src>
import math
from functools import partial

import jax
import jax.numpy as jnp
from jax.experimental import pallas as pl
from jax.experimental.pallas import tpu as pltpu

_MAX_PACKED_LANES = 1024  # cap on the packed lane width (fold matrix <= 4 MiB)


def _vmem_capacity_bytes():
    try:
        cap = int(pltpu.get_tpu_info().vmem_capacity_bytes)
        if cap > 0:
            return cap
    except Exception:
        pass
    return 64 * 1024 * 1024  # conservative fallback (v7x per-core VMEM)


# ---------------------------------------------------------------------------
# Fused single-pass kernel (small/mid inputs): whole packed view in VMEM.
# ---------------------------------------------------------------------------
def _fused_bn_kernel(x_ref, gamma_ref, beta_ref, *rest, eps, n_per_channel,
                     lane_groups):
    if lane_groups > 1:
        fold_ref, o_ref = rest
    else:
        (o_ref,) = rest

    xv = x_ref[...].astype(jnp.float32)
    s = jnp.sum(xv, axis=0, keepdims=True)          # per-lane sum        (1, L)
    sq = jnp.sum(xv * xv, axis=0, keepdims=True)    # per-lane sum(x^2)   (1, L)

    if lane_groups > 1:
        # Fold the lanes that share a channel (lane l <-> channel l % C) with
        # one tiny matmul against the (L, L) group-indicator matrix; afterwards
        # every lane holds its channel's total.  MXU is otherwise idle here.
        fold = fold_ref[...]
        s = jnp.dot(s, fold, preferred_element_type=jnp.float32)
        sq = jnp.dot(sq, fold, preferred_element_type=jnp.float32)

    mean = s / n_per_channel
    var = jnp.maximum(sq / n_per_channel - mean * mean, 0.0)
    rstd = jax.lax.rsqrt(var + eps)
    scale = gamma_ref[...] * rstd
    shift = beta_ref[...] - mean * scale
    o_ref[...] = (xv * scale + shift).astype(o_ref.dtype)


# ---------------------------------------------------------------------------
# Tiled path, kernel 1: per-lane sum / sum(x^2) over row blocks.
# Grid = (2, blocks_per_core): the leading "parallel" axis gives each v7x
# TensorCore its own (8, lanes) accumulator block (index (c, 0)); the row-block
# axis is the sequential reduction.  Overshoot / ragged blocks are masked.
# ---------------------------------------------------------------------------
def _stats_kernel(x_ref, sum_ref, sumsq_ref, *, n_rows, blocks_per_core):
    c = pl.program_id(0)
    i = pl.program_id(1)
    tm = x_ref.shape[0]
    g = c * blocks_per_core + i          # global row-block index

    @pl.when(i == 0)
    def _():
        sum_ref[...] = jnp.zeros_like(sum_ref)
        sumsq_ref[...] = jnp.zeros_like(sumsq_ref)

    valid = n_rows - g * tm              # rows of this block that are real

    def accumulate(xv):
        sum_ref[...] += jnp.sum(xv, axis=0, keepdims=True)
        sumsq_ref[...] += jnp.sum(xv * xv, axis=0, keepdims=True)

    @pl.when(valid >= tm)                # full block: no mask at all
    def _():
        accumulate(x_ref[...].astype(jnp.float32))

    @pl.when(jnp.logical_and(valid > 0, valid < tm))   # ragged last block
    def _():
        row_idx = jax.lax.broadcasted_iota(jnp.int32, x_ref.shape, 0)
        xv = jnp.where(row_idx < valid, x_ref[...].astype(jnp.float32), 0.0)
        accumulate(xv)
    # valid <= 0 (overshoot block when nt is odd): contributes nothing.


# ---------------------------------------------------------------------------
# Tiled path, kernel 2: out = x * scale + shift (gamma/beta/mean/rstd folded).
# ---------------------------------------------------------------------------
def _apply_kernel(x_ref, scale_ref, shift_ref, o_ref):
    o_ref[...] = (x_ref[...].astype(jnp.float32) * scale_ref[...]
                  + shift_ref[...]).astype(o_ref.dtype)


def _finalize_scale_shift(sums, sumsqs, gamma, beta, n, lane_groups, eps):
    """Tiny wrapper math: fold the 2 per-core / per-lane partials to
    per-channel scale & shift, then tile back to the packed (1, lanes) layout."""
    c = gamma.shape[0]
    s_lane = jnp.sum(sums[0::8], axis=0)      # (lanes,) — rows 0 & 8 = core partials
    sq_lane = jnp.sum(sumsqs[0::8], axis=0)
    s_c = jnp.sum(s_lane.reshape(lane_groups, c), axis=0)
    sq_c = jnp.sum(sq_lane.reshape(lane_groups, c), axis=0)
    mean = s_c / n
    var = jnp.maximum(sq_c / n - mean * mean, 0.0)
    rstd = jax.lax.rsqrt(var + eps)
    scale = gamma * rstd
    shift = beta - mean * scale
    lanes = lane_groups * c
    return (jnp.tile(scale, lane_groups).reshape(1, lanes),
            jnp.tile(shift, lane_groups).reshape(1, lanes))


def batchnorm_adapter_2d(feat, gamma, beta, *, eps=1e-5,
                         block_bytes=None, fused_bytes_limit=None):
    """Training-mode forward of BatchNormAdapter2D. feat: (b, x, y, c)."""
    B, H, W, C = feat.shape
    N = B * H * W
    out_dtype = feat.dtype
    itemsize = feat.dtype.itemsize
    gamma = gamma.astype(jnp.float32)
    beta = beta.astype(jnp.float32)

    # --- per-generation VMEM budget (128 MiB v5e/v6e, 64 MiB v7x) -----------
    vmem_cap = _vmem_capacity_bytes()
    vmem_limit = int(min(max(vmem_cap * 3 // 4, 24 * 2**20), 96 * 2**20))
    if fused_bytes_limit is None:
        fused_bytes_limit = vmem_limit // 8      # f32 bytes of the packed view
    if block_bytes is None:
        block_bytes = min(4 * 2**20, vmem_limit // 12)

    # --- lane packing: channel axis packed densely into the lane dim --------
    lanes = C * (128 // math.gcd(C, 128))        # lcm(C, 128): channel == lane % C
    if lanes > max(_MAX_PACKED_LANES, C):        # huge C coprime with 128 (rare)
        lanes = C                                # channels directly on lanes
    lane_groups = lanes // C
    total = N * C
    rows = pl.cdiv(total, lanes)
    pad = rows * lanes - total

    flat = feat.reshape(-1)
    if pad:
        # TODO(synk): jnp.pad copies the whole stream; a split main/tail launch
        # would avoid the extra HBM round trip for ragged N*C.
        flat = jnp.pad(flat, (0, pad))
    x2d = flat.reshape(rows, lanes)
    gamma_l = jnp.tile(gamma, lane_groups).reshape(1, lanes)
    beta_l = jnp.tile(beta, lane_groups).reshape(1, lanes)

    def unpack(out2d):
        out_flat = out2d.reshape(-1)
        if pad:
            out_flat = out_flat[:total]
        return out_flat.reshape(B, H, W, C)

    # --- small / mid inputs: one fused pallas_call (x read once) ------------
    if rows * lanes * 4 <= fused_bytes_limit:
        args = [x2d, gamma_l, beta_l]
        in_specs = [pl.BlockSpec((rows, lanes), lambda i: (0, 0)),
                    pl.BlockSpec((1, lanes), lambda i: (0, 0)),
                    pl.BlockSpec((1, lanes), lambda i: (0, 0))]
        if lane_groups > 1:
            lane_ch = jnp.arange(lanes, dtype=jnp.int32) % C
            fold = (lane_ch[:, None] == lane_ch[None, :]).astype(jnp.float32)
            args.append(fold)
            in_specs.append(pl.BlockSpec((lanes, lanes), lambda i: (0, 0)))
        out2d = pl.pallas_call(
            partial(_fused_bn_kernel, eps=eps, n_per_channel=float(N),
                    lane_groups=lane_groups),
            out_shape=jax.ShapeDtypeStruct((rows, lanes), out_dtype),
            grid=(1,),
            in_specs=in_specs,
            out_specs=pl.BlockSpec((rows, lanes), lambda i: (0, 0)),
            compiler_params=pltpu.CompilerParams(
                dimension_semantics=("arbitrary",),
                vmem_limit_bytes=vmem_limit),
        )(*args)
        return unpack(out2d)

    # --- large inputs: tiled stats pass + tiled normalize pass --------------
    sub = 8 * max(1, 4 // itemsize)              # dtype sublane packing (8/16/32)
    per_row = lanes * itemsize
    tm = min(rows, max(sub, block_bytes // per_row))
    if tm < rows:
        tm = max(sub, (tm // sub) * sub)
    nt = pl.cdiv(rows, tm)

    n_cores = 2                                  # 2-way split for v7x megacore
    bpc = pl.cdiv(nt, n_cores)
    last_block = nt - 1

    sums, sumsqs = pl.pallas_call(
        partial(_stats_kernel, n_rows=rows, blocks_per_core=bpc),
        out_shape=(jax.ShapeDtypeStruct((n_cores * 8, lanes), jnp.float32),
                   jax.ShapeDtypeStruct((n_cores * 8, lanes), jnp.float32)),
        grid=(n_cores, bpc),
        in_specs=[pl.BlockSpec(
            (tm, lanes),
            lambda c, i: (jnp.minimum(c * bpc + i, last_block), 0))],
        out_specs=(pl.BlockSpec((8, lanes), lambda c, i: (c, 0)),
                   pl.BlockSpec((8, lanes), lambda c, i: (c, 0))),
        compiler_params=pltpu.CompilerParams(
            dimension_semantics=("parallel", "arbitrary"),
            vmem_limit_bytes=vmem_limit),
    )(x2d)

    scale_l, shift_l = _finalize_scale_shift(sums, sumsqs, gamma, beta,
                                             float(N), lane_groups, eps)

    out2d = pl.pallas_call(
        _apply_kernel,
        out_shape=jax.ShapeDtypeStruct((rows, lanes), out_dtype),
        grid=(nt,),
        in_specs=[pl.BlockSpec((tm, lanes), lambda i: (i, 0)),
                  pl.BlockSpec((1, lanes), lambda i: (0, 0)),
                  pl.BlockSpec((1, lanes), lambda i: (0, 0))],
        out_specs=pl.BlockSpec((tm, lanes), lambda i: (i, 0)),
        compiler_params=pltpu.CompilerParams(
            dimension_semantics=("parallel",),
            vmem_limit_bytes=vmem_limit),
    )(x2d, scale_l, shift_l)

    return unpack(out2d)


def _reference(feat, gamma, beta, eps):
    f = feat.astype(jnp.float32)
    mean = jnp.mean(f, axis=(0, 1, 2), keepdims=True)
    var = jnp.mean((f - mean) ** 2, axis=(0, 1, 2), keepdims=True)
    return (f - mean) * jax.lax.rsqrt(var + eps) * gamma + beta


if __name__ == "__main__":
    eps = 1e-5
    key = jax.random.PRNGKey(0)
    k1, k2, k3, k4 = jax.random.split(key, 4)

    # Module config: d_feat = 4 channels, channels-last input.
    B, H, W, C = 2, 16, 16, 4
    feat = jax.random.normal(k1, (B, H, W, C), dtype=jnp.float32)
    gamma = 1.0 + 0.1 * jax.random.normal(k2, (C,), dtype=jnp.float32)
    beta = 0.1 * jax.random.normal(k3, (C,), dtype=jnp.float32)

    # 1) Shipped config -> fused single-call, lane-packed path.
    out = jax.block_until_ready(batchnorm_adapter_2d(feat, gamma, beta, eps=eps))
    ref = _reference(feat, gamma, beta, eps)
    assert out.shape == (B, H, W, C)
    assert jnp.allclose(out, ref, atol=1e-3, rtol=1e-3), "fused path mismatch"

    # 2) Tiled two-pass path (forced): even row tiles, 2-way stats split.
    feat2 = jax.random.normal(k2, (2, 32, 32, C), dtype=jnp.float32)
    out2 = jax.block_until_ready(
        batchnorm_adapter_2d(feat2, gamma, beta, eps=eps,
                             block_bytes=4096, fused_bytes_limit=0))
    assert jnp.allclose(out2, _reference(feat2, gamma, beta, eps),
                        atol=1e-3, rtol=1e-3), "tiled path mismatch"

    # 3) Tiled path with a ragged last row tile (masked in-kernel, no padding).
    feat3 = jax.random.normal(k3, (2, 20, 20, C), dtype=jnp.float32)
    out3 = jax.block_until_ready(
        batchnorm_adapter_2d(feat3, gamma, beta, eps=eps,
                             block_bytes=4096, fused_bytes_limit=0))
    assert jnp.allclose(out3, _reference(feat3, gamma, beta, eps),
                        atol=1e-3, rtol=1e-3), "ragged tile mismatch"

    # 4) N*C not a multiple of the packed lane width -> zero-padded tail.
    feat4 = jax.random.normal(k4, (1, 5, 5, C), dtype=jnp.float32)
    out4 = jax.block_until_ready(batchnorm_adapter_2d(feat4, gamma, beta, eps=eps))
    assert jnp.allclose(out4, _reference(feat4, gamma, beta, eps),
                        atol=1e-3, rtol=1e-3), "padded tail mismatch"

    # 5) Channel count that does not divide 128 (lanes = lcm(3,128) = 384).
    C5 = 3
    gamma5 = 1.0 + 0.1 * jax.random.normal(k2, (C5,), dtype=jnp.float32)
    beta5 = 0.1 * jax.random.normal(k3, (C5,), dtype=jnp.float32)
    feat5 = jax.random.normal(k1, (2, 8, 8, C5), dtype=jnp.float32)
    out5 = jax.block_until_ready(batchnorm_adapter_2d(feat5, gamma5, beta5, eps=eps))
    assert jnp.allclose(out5, _reference(feat5, gamma5, beta5, eps),
                        atol=1e-3, rtol=1e-3), "non-dividing C mismatch"

    # 6) bf16 input through the tiled path (dtype-aware tile sizing).
    feat6 = jax.random.normal(k4, (2, 32, 32, C), dtype=jnp.bfloat16)
    out6 = jax.block_until_ready(
        batchnorm_adapter_2d(feat6, gamma, beta, eps=eps,
                             block_bytes=8192, fused_bytes_limit=0))
    assert out6.dtype == jnp.bfloat16
    assert jnp.allclose(out6.astype(jnp.float32),
                        _reference(feat6, gamma, beta, eps),
                        atol=2e-2, rtol=2e-2), "bf16 tiled path mismatch"

    print("KERNEL_OK")
</pallas_src>

<mosaic_0001>
module attributes {stable_mosaic.version = 11 : i64} {
  func.func @_fused_bn_kernel(%arg0: i32, %arg1: memref<16x128xf32, #tpu.memory_space<vmem>>, %arg2: memref<1x128xf32, #tpu.memory_space<vmem>>, %arg3: memref<1x128xf32, #tpu.memory_space<vmem>>, %arg4: memref<128x128xf32, #tpu.memory_space<vmem>>, %arg5: memref<16x128xf32, #tpu.memory_space<vmem>>) attributes {dimension_semantics = [#tpu.dimension_semantics<arbitrary>], iteration_bounds = array<i64: 1>, scalar_prefetch = 0 : i64, scratch_operands = 0 : i64, tpu.core_type = #tpu.core_type<tc>, window_params = [{pipeline_mode = #tpu.pipeline_mode<synchronous>, transform_indices = @transform_0, window_bounds = array<i64: 16, 128>}, {pipeline_mode = #tpu.pipeline_mode<synchronous>, transform_indices = @transform_1, window_bounds = array<i64: 1, 128>}, {pipeline_mode = #tpu.pipeline_mode<synchronous>, transform_indices = @transform_2, window_bounds = array<i64: 1, 128>}, {pipeline_mode = #tpu.pipeline_mode<synchronous>, transform_indices = @transform_3, window_bounds = array<i64: 128, 128>}, {pipeline_mode = #tpu.pipeline_mode<synchronous>, transform_indices = @transform_4, window_bounds = array<i64: 16, 128>}]} {
    %c0 = arith.constant 0 : index
    %c0_0 = arith.constant 0 : index
    %0 = vector.load %arg1[%c0, %c0_0] : memref<16x128xf32, #tpu.memory_space<vmem>>, vector<16x128xf32>
    %cst = arith.constant dense<0.000000e+00> : vector<128xf32>
    %1 = vector.multi_reduction <add>, %0, %cst [0] : vector<16x128xf32> to vector<128xf32>
    %2 = vector.shape_cast %1 : vector<128xf32> to vector<1x128xf32>
    %3 = arith.mulf %0, %0 : vector<16x128xf32>
    %cst_1 = arith.constant dense<0.000000e+00> : vector<128xf32>
    %4 = vector.multi_reduction <add>, %3, %cst_1 [0] : vector<16x128xf32> to vector<128xf32>
    %5 = vector.shape_cast %4 : vector<128xf32> to vector<1x128xf32>
    %c0_2 = arith.constant 0 : index
    %c0_3 = arith.constant 0 : index
    %6 = vector.load %arg4[%c0_2, %c0_3] : memref<128x128xf32, #tpu.memory_space<vmem>>, vector<128x128xf32>
    %cst_4 = arith.constant dense<0.000000e+00> : vector<1x128xf32>
    %7 = tpu.matmul %2, %6, %cst_4 {dimension_numbers = #tpu.dot_dimension_numbers<[1], [0], [0], [1], [0, 0, 1, 1], [], []>} : vector<1x128xf32>, vector<128x128xf32>, vector<1x128xf32> -> vector<1x128xf32>
    %cst_5 = arith.constant dense<0.000000e+00> : vector<1x128xf32>
    %8 = tpu.matmul %5, %6, %cst_5 {dimension_numbers = #tpu.dot_dimension_numbers<[1], [0], [0], [1], [0, 0, 1, 1], [], []>} : vector<1x128xf32>, vector<128x128xf32>, vector<1x128xf32> -> vector<1x128xf32>
    %cst_6 = arith.constant 5.120000e+02 : f32
    %9 = vector.broadcast %cst_6 : f32 to vector<1x128xf32>
    %10 = arith.divf %7, %9 : vector<1x128xf32>
    %cst_7 = arith.constant 5.120000e+02 : f32
    %11 = vector.broadcast %cst_7 : f32 to vector<1x128xf32>
    %12 = arith.divf %8, %11 : vector<1x128xf32>
    %13 = arith.mulf %10, %10 : vector<1x128xf32>
    %14 = arith.subf %12, %13 : vector<1x128xf32>
    %cst_8 = arith.constant 0.000000e+00 : f32
    %15 = vector.broadcast %cst_8 : f32 to vector<1x128xf32>
    %16 = arith.maximumf %14, %15 : vector<1x128xf32>
    %cst_9 = arith.constant 9.99999974E-6 : f32
    %17 = vector.broadcast %cst_9 : f32 to vector<1x128xf32>
    %18 = arith.addf %16, %17 : vector<1x128xf32>
    %19 = math.rsqrt %18 : vector<1x128xf32>
    %c0_10 = arith.constant 0 : index
    %c0_11 = arith.constant 0 : index
    %20 = vector.load %arg2[%c0_10, %c0_11] : memref<1x128xf32, #tpu.memory_space<vmem>>, vector<1x128xf32>
    %21 = arith.mulf %20, %19 : vector<1x128xf32>
    %c0_12 = arith.constant 0 : index
    %c0_13 = arith.constant 0 : index
    %22 = vector.load %arg3[%c0_12, %c0_13] : memref<1x128xf32, #tpu.memory_space<vmem>>, vector<1x128xf32>
    %23 = arith.mulf %10, %21 : vector<1x128xf32>
    %24 = arith.subf %22, %23 : vector<1x128xf32>
    %25 = vector.broadcast %21 : vector<1x128xf32> to vector<16x128xf32>
    %26 = arith.mulf %0, %25 : vector<16x128xf32>
    %27 = vector.broadcast %24 : vector<1x128xf32> to vector<16x128xf32>
    %28 = arith.addf %26, %27 : vector<16x128xf32>
    %c0_14 = arith.constant 0 : index
    %c0_15 = arith.constant 0 : index
    %29 = vector.load %arg5[%c0_14, %c0_15] : memref<16x128xf32, #tpu.memory_space<vmem>>, vector<16x128xf32>
    tpu.vector_store %arg5[%c0_14, %c0_15], %28 {strides = array<i32>} : memref<16x128xf32, #tpu.memory_space<vmem>>, vector<16x128xf32>,
    return
  }
  func.func @transform_0(%arg0: i32) -> (i32, i32) {
    %c0_i32 = arith.constant 0 : i32
    %c0_i32_0 = arith.constant 0 : i32
    %c0_i32_1 = arith.constant 0 : i32
    return %c0_i32, %c0_i32_0 : i32, i32
  }
  func.func @transform_1(%arg0: i32) -> (i32, i32) {
    %c0_i32 = arith.constant 0 : i32
    %c0_i32_0 = arith.constant 0 : i32
    %c0_i32_1 = arith.constant 0 : i32
    return %c0_i32, %c0_i32_0 : i32, i32
  }
  func.func @transform_2(%arg0: i32) -> (i32, i32) {
    %c0_i32 = arith.constant 0 : i32
    %c0_i32_0 = arith.constant 0 : i32
    %c0_i32_1 = arith.constant 0 : i32
    return %c0_i32, %c0_i32_0 : i32, i32
  }
  func.func @transform_3(%arg0: i32) -> (i32, i32) {
    %c0_i32 = arith.constant 0 : i32
    %c0_i32_0 = arith.constant 0 : i32
    %c0_i32_1 = arith.constant 0 : i32
    return %c0_i32, %c0_i32_0 : i32, i32
  }
  func.func @transform_4(%arg0: i32) -> (i32, i32) {
    %c0_i32 = arith.constant 0 : i32
    %c0_i32_0 = arith.constant 0 : i32
    %c0_i32_1 = arith.constant 0 : i32
    return %c0_i32, %c0_i32_0 : i32, i32
  }
}

</mosaic_0001>

<llo_original>
// kernel: tpu_custom_call.1
$region0: #{tpu_custom_call.1}
  #allocation0 [shape = 'u32[]', space=smem, size = 0x4, offset = 0x4, fixed_abs, tag = 'smem constant byte address 0x4 - core index']
  #allocation1 [shape = 'u32[144,128]{1,0:T(1,128)}', space=vmem, size = 0x12000, scoped, tag = 'internal scratch']
  %s0 = inlined_call_operand.hbm [shape: f32[16,128], index: 0, kind: input, shape index: {}]
  %s1 = inlined_call_operand.vmem [shape: f32[1,128], index: 1, kind: input, shape index: {}]
  %s2 = inlined_call_operand.vmem [shape: f32[1,128], index: 2, kind: input, shape index: {}]
  %s3 = inlined_call_operand.hbm [shape: f32[128,128], index: 3, kind: input, shape index: {}]
  %s4 = inlined_call_operand.hbm [shape: f32[16,128], index: 4, kind: output, shape index: {}]
  %s5 = sld [smem:[#allocation0]]
  $region34: #{tpu_custom_call.1} parent=0
    _
  %s7 = ssub.s32 1, %s5
  %s8 = scalar_select 0, %s7, %s5
  $region1: #{tpu_custom_call.1} parent=0
    #allocation2 [shape = 'u8[8192]{0}', space=vmem, size = 0x2000, scoped, tag = 'input window, operand 0, single buffered']
    #allocation3 [shape = 's32[1]{0}', space=sflag, size = 0x4, scoped, tag = 'scoped memory for tpu_custom_call.1']
    #allocation4 [shape = 's32[1]{0}', space=sflag, size = 0x4, scoped, tag = 'scoped memory for tpu_custom_call.1']
    #allocation5 [shape = 'u8[65536]{0}', space=vmem, size = 0x10000, scoped, tag = 'input window, operand 3, single buffered']
    #allocation6 [shape = 's32[1]{0}', space=sflag, size = 0x4, scoped, tag = 'scoped memory for tpu_custom_call.1']
    #allocation7 [shape = 'u8[8192]{0}', space=vmem, size = 0x2000, scoped, tag = 'output window, operand 0, single buffered']
    %9 = vsyncpa [#allocation3], 0
    %10 = vsyncpa [#allocation6], 0
    %11 = vsyncpa [#allocation4], 0
    // Predicated region
    $region2: #{tpu_custom_call.1} parent=1 // pred_check
      _
    $region3: #{tpu_custom_call.1} parent=1 // pred_check_branch
      %13 = sbr.rel (0) target = $region5
    $region4: #{tpu_custom_call.1} parent=1 // pred_region
      %s15 = ssub.s32 256, 256
      %16 = vsyncadd [#allocation3], %s15
      %s17 = sshll.u32 [#allocation2], 4
      %s18 = int_to_ptr.vmem [resolvable:$true] %s17
      %23 = dma.hbm_to_vmem [thread:$0]  %s0, 256, %s18, [#allocation3], 128, 128, 8
    $region5: #{tpu_custom_call.1} parent=1 // pred_fallthru
      _
    // Predicated region
    $region6: #{tpu_custom_call.1} parent=1 // pred_check
      _
    $region7: #{tpu_custom_call.1} parent=1 // pred_check_branch
      %25 = sbr.rel (0) target = $region9
    $region8: #{tpu_custom_call.1} parent=1 // pred_region
      _
    $region9: #{tpu_custom_call.1} parent=1 // pred_fallthru
      _
    // Predicated region
    $region10: #{tpu_custom_call.1} parent=1 // pred_check
      _
    $region11: #{tpu_custom_call.1} parent=1 // pred_check_branch
      %27 = sbr.rel (0) target = $region13
    $region12: #{tpu_custom_call.1} parent=1 // pred_region
      _
    $region13: #{tpu_custom_call.1} parent=1 // pred_fallthru
      _
    // Predicated region
    $region14: #{tpu_custom_call.1} parent=1 // pred_check
      _
    $region15: #{tpu_custom_call.1} parent=1 // pred_check_branch
      %29 = sbr.rel (0) target = $region17
    $region16: #{tpu_custom_call.1} parent=1 // pred_region
      %s31 = ssub.s32 2048, 2048
      %32 = vsyncadd [#allocation6], %s31
      %s33 = sshll.u32 [#allocation5], 4
      %s34 = int_to_ptr.vmem [resolvable:$true] %s33
      %39 = dma.hbm_to_vmem [thread:$0]  %s3, 2048, %s34, [#allocation6], 128, 128, 8
    $region17: #{tpu_custom_call.1} parent=1 // pred_fallthru
      _
    // Predicated region
    $region18: #{tpu_custom_call.1} parent=1 // pred_check
      _
    $region19: #{tpu_custom_call.1} parent=1 // pred_check_branch
      %41 = sbr.rel (0) target = $region21
    $region20: #{tpu_custom_call.1} parent=1 // pred_region
      %42 = dma.done [#allocation3], 256
    $region21: #{tpu_custom_call.1} parent=1 // pred_fallthru
      _
    // Predicated region
    $region22: #{tpu_custom_call.1} parent=1 // pred_check
      _
    $region23: #{tpu_custom_call.1} parent=1 // pred_check_branch
      %44 = sbr.rel (0) target = $region25
    $region24: #{tpu_custom_call.1} parent=1 // pred_region
      %45 = dma.done [#allocation6], 2048
    $region25: #{tpu_custom_call.1} parent=1 // pred_fallthru
      _
    %v46 = vld [vmem:[#allocation2] sm:$0xff]
    %v47 = vld [vmem:[#allocation2 + $0x8] sm:$0xff]
    %v48 = vadd.f32 %v46, %v47
    %v49 = vrot.slane %v48, 4
    %v50 = vadd.f32 %v48, %v49
    %v51 = vrot.slane %v50, 2
    %v52 = vadd.f32 %v50, %v51
    %v53 = vrot.slane %v52, 1
    %v54 = vadd.f32 %v52, %v53
    %v55 = vmul.f32 %v46, %v46
    %v56 = vmul.f32 %v47, %v47
    %v57 = vadd.f32 %v55, %v56
    %v58 = vrot.slane %v57, 4
    %v59 = vadd.f32 %v57, %v58
    %v60 = vrot.slane %v59, 2
    %v61 = vadd.f32 %v59, %v60
    %v62 = vrot.slane %v61, 1
    %v63 = vadd.f32 %v61, %v62
    %v64 = vld [vmem:[#allocation5] sm:$0xff]
    %v65 = vld [vmem:[#allocation5 + $0x8] sm:$0xff]
    %v66 = vld [vmem:[#allocation5 + $0x10] sm:$0xff]
    %v67 = vld [vmem:[#allocation5 + $0x18] sm:$0xff]
    %v68 = vld [vmem:[#allocation5 + $0x20] sm:$0xff]
    %v69 = vld [vmem:[#allocation5 + $0x28] sm:$0xff]
    %v70 = vld [vmem:[#allocation5 + $0x30] sm:$0xff]
    %v71 = vld [vmem:[#allocation5 + $0x38] sm:$0xff]
    %v72 = vld [vmem:[#allocation5 + $0x40] sm:$0xff]
    %v73 = vld [vmem:[#allocation5 + $0x48] sm:$0xff]
    %v74 = vld [vmem:[#allocation5 + $0x50] sm:$0xff]
    %v75 = vld [vmem:[#allocation5 + $0x58] sm:$0xff]
    %v76 = vld [vmem:[#allocation5 + $0x60] sm:$0xff]
    %v77 = vld [vmem:[#allocation5 + $0x68] sm:$0xff]
    %v78 = vld [vmem:[#allocation5 + $0x70] sm:$0xff]
    %v79 = vld [vmem:[#allocation5 + $0x78] sm:$0xff]
    %80 = vmatprep.subr.mxu0 0.0
    %81 = vmatpush1.msra.mxu0 %v64
    %82 = vmatprep.subr.mxu0 0.0
    %83 = vmatpush1.msra.mxu0 %v65
    %84 = vmatprep.subr.mxu0 0.0
    %85 = vmatpush1.msra.mxu0 %v66
    %86 = vmatprep.subr.mxu0 0.0
    %87 = vmatpush1.msra.mxu0 %v67
    %88 = vmatprep.subr.mxu0 0.0
    %89 = vmatpush1.msra.mxu0 %v68
    %90 = vmatprep.subr.mxu0 0.0
    %91 = vmatpush1.msra.mxu0 %v69
    %92 = vmatprep.subr.mxu0 0.0
    %93 = vmatpush1.msra.mxu0 %v70
    %94 = vmatprep.subr.mxu0 0.0
    %95 = vmatpush1.msra.mxu0 %v71
    %96 = vmatprep.subr.mxu0 0.0
    %97 = vmatpush1.msra.mxu0 %v72
    %98 = vmatprep.subr.mxu0 0.0
    %99 = vmatpush1.msra.mxu0 %v73
    %100 = vmatprep.subr.mxu0 0.0
    %101 = vmatpush1.msra.mxu0 %v74
    %102 = vmatprep.subr.mxu0 0.0
    %103 = vmatpush1.msra.mxu0 %v75
    %104 = vmatprep.subr.mxu0 0.0
    %105 = vmatpush1.msra.mxu0 %v76
    %106 = vmatprep.subr.mxu0 0.0
    %107 = vmatpush1.msra.mxu0 %v77
    %108 = vmatprep.subr.mxu0 0.0
    %109 = vmatpush1.msra.mxu0 %v78
    %110 = vmatprep.subr.mxu0 0.0
    %111 = vmatpush1.msra.mxu0 %v79
    %112 = vmatprep.subr.mxu0 0.0
    %113 = vmatpush1.msra.mxu0 0.0
    %114 = vmatprep.subr.mxu0 0.0
    %115 = vmatpush1.msra.mxu0 0.0
    %116 = vmatprep.subr.mxu0 0.0
    %117 = vmatpush1.msra.mxu0 0.0
    %118 = vmatprep.subr.mxu0 0.0
    %119 = vmatpush1.msra.mxu0 0.0
    %120 = vmatprep.subr.mxu0 0.0
    %121 = vmatpush1.msra.mxu0 0.0
    %122 = vmatprep.subr.mxu0 0.0
    %123 = vmatpush1.msra.mxu0 0.0
    %124 = vmatprep.subr.mxu0 0.0
    %125 = vmatpush1.msra.mxu0 0.0
    %126 = vmatprep.subr.mxu0 0.0
    %127 = vmatpush1.msra.mxu0 0.0
    %128 = vmatprep.subr.mxu0 0.0
    %129 = vmatpush1.msra.mxu0 0.0
    %130 = vmatprep.subr.mxu0 0.0
    %131 = vmatpush1.msra.mxu0 0.0
    %132 = vmatprep.subr.mxu0 0.0
    %133 = vmatpush1.msra.mxu0 0.0
    %134 = vmatprep.subr.mxu0 0.0
    %135 = vmatpush1.msra.mxu0 0.0
    %136 = vmatprep.subr.mxu0 0.0
    %137 = vmatpush1.msra.mxu0 0.0
    %138 = vmatprep.subr.mxu0 0.0
    %139 = vmatpush1.msra.mxu0 0.0
    %140 = vmatprep.subr.mxu0 0.0
    %141 = vmatpush1.msra.mxu0 0.0
    %142 = vmatprep.subr.mxu0 0.0
    %143 = vmatpush1.msra.mxu0 0.0
    %144 = vmatprep.mubr.f32.mxu0 0.0
    %145 = vmatmul.mubr.f32.gmra.mrb[0].mxu0 %v54
    %v146 = vpop.f32.mrb[0].mxu0
    %v147 = vadd.f32 0.0, %v146
    %v148 = vpop.f32.mrb[0].mxu0
    %149 = vdwg.mxu0
    %150 = vmatprep.subr.mxu0 0.0
    %151 = vmatpush1.msra.mxu0 %v64
    %152 = vmatprep.subr.mxu0 0.0
    %153 = vmatpush1.msra.mxu0 %v65
    %154 = vmatprep.subr.mxu0 0.0
    %155 = vmatpush1.msra.mxu0 %v66
    %156 = vmatprep.subr.mxu0 0.0
    %157 = vmatpush1.msra.mxu0 %v67
    %158 = vmatprep.subr.mxu0 0.0
    %159 = vmatpush1.msra.mxu0 %v68
    %160 = vmatprep.subr.mxu0 0.0
    %161 = vmatpush1.msra.mxu0 %v69
    %162 = vmatprep.subr.mxu0 0.0
    %163 = vmatpush1.msra.mxu0 %v70
    %164 = vmatprep.subr.mxu0 0.0
    %165 = vmatpush1.msra.mxu0 %v71
    %166 = vmatprep.subr.mxu0 0.0
    %167 = vmatpush1.msra.mxu0 %v72
    %168 = vmatprep.subr.mxu0 0.0
    %169 = vmatpush1.msra.mxu0 %v73
    %170 = vmatprep.subr.mxu0 0.0
    %171 = vmatpush1.msra.mxu0 %v74
    %172 = vmatprep.subr.mxu0 0.0
    %173 = vmatpush1.msra.mxu0 %v75
    %174 = vmatprep.subr.mxu0 0.0
    %175 = vmatpush1.msra.mxu0 %v76
    %176 = vmatprep.subr.mxu0 0.0
    %177 = vmatpush1.msra.mxu0 %v77
    %178 = vmatprep.subr.mxu0 0.0
    %179 = vmatpush1.msra.mxu0 %v78
    %180 = vmatprep.subr.mxu0 0.0
    %181 = vmatpush1.msra.mxu0 %v79
    %182 = vmatprep.subr.mxu0 0.0
    %183 = vmatpush1.msra.mxu0 0.0
    %184 = vmatprep.subr.mxu0 0.0
    %185 = vmatpush1.msra.mxu0 0.0
    %186 = vmatprep.subr.mxu0 0.0
    %187 = vmatpush1.msra.mxu0 0.0
    %188 = vmatprep.subr.mxu0 0.0
    %189 = vmatpush1.msra.mxu0 0.0
    %190 = vmatprep.subr.mxu0 0.0
    %191 = vmatpush1.msra.mxu0 0.0
    %192 = vmatprep.subr.mxu0 0.0
    %193 = vmatpush1.msra.mxu0 0.0
    %194 = vmatprep.subr.mxu0 0.0
    %195 = vmatpush1.msra.mxu0 0.0
    %196 = vmatprep.subr.mxu0 0.0
    %197 = vmatpush1.msra.mxu0 0.0
    %198 = vmatprep.subr.mxu0 0.0
    %199 = vmatpush1.msra.mxu0 0.0
    %200 = vmatprep.subr.mxu0 0.0
    %201 = vmatpush1.msra.mxu0 0.0
    %202 = vmatprep.subr.mxu0 0.0
    %203 = vmatpush1.msra.mxu0 0.0
    %204 = vmatprep.subr.mxu0 0.0
    %205 = vmatpush1.msra.mxu0 0.0
    %206 = vmatprep.subr.mxu0 0.0
    %207 = vmatpush1.msra.mxu0 0.0
    %208 = vmatprep.subr.mxu0 0.0
    %209 = vmatpush1.msra.mxu0 0.0
    %210 = vmatprep.subr.mxu0 0.0
    %211 = vmatpush1.msra.mxu0 0.0
    %212 = vmatprep.subr.mxu0 0.0
    %213 = vmatpush1.msra.mxu0 0.0
    %214 = vmatprep.mubr.f32.mxu0 0.0
    %215 = vmatmul.mubr.f32.gmra.mrb[0].mxu0 %v63
    %v216 = vpop.f32.mrb[0].mxu0
    %v217 = vadd.f32 0.0, %v216
    %v218 = vpop.f32.mrb[0].mxu0
    %219 = vdwg.mxu0
    %v220 = vrcp.pop 512.0
    %v221 = vmul.f32 %v147, %v220
    %v222 = vmul.f32 %v217, %v220
    %v223 = vmul.f32 %v221, %v221
    %v224 = vsub.f32 %v222, %v223
    %v225 = vmax.f32 %v224, 0.0
    %v226 = vadd.f32 %v225, 1e-05
    %v227 = vrsqrt.pop %v226
    %v228 = vld [vmem:[%s1] sm:$0x1]
    %v229 = vmul.f32 %v228, %v227
    %v230 = vld [vmem:[%s2] sm:$0x1]
    %v231 = vmul.f32 %v221, %v229
    %v232 = vsub.f32 %v230, %v231
    %v234 = vlaneseq
    %v235 = vshrl.u32 %v234, 7
    %v236 = vsub.s32 0, %v235
    %v237 = vrot.slane %v229, %v236
    %v239 = vmul.f32 %v46, %v237
    %v240 = vmul.f32 %v47, %v237
    %v242 = vlaneseq
    %v243 = vshrl.u32 %v242, 7
    %v244 = vsub.s32 0, %v243
    %v245 = vrot.slane %v232, %v244
    %v247 = vadd.f32 %v239, %v245
    %v248 = vadd.f32 %v240, %v245
    %249 = vst [vmem:[#allocation7] sm:$0xff] %v247
    %250 = vst [vmem:[#allocation7 + $0x8] sm:$0xff] %v248
    // Predicated region
    $region26: #{tpu_custom_call.1} parent=1 // pred_check
      _
    $region27: #{tpu_custom_call.1} parent=1 // pred_check_branch
      %252 = sbr.rel (0) target = $region29
    $region28: #{tpu_custom_call.1} parent=1 // pred_region
      %s254 = ssub.s32 256, 256
      %255 = vsyncadd [#allocation4], %s254
      %s256 = sshll.u32 [#allocation7], 4
      %s257 = int_to_ptr.vmem [resolvable:$true] %s256
      %262 = dma.vmem_to_hbm [thread:$0]  %s257, 256, %s4, [#allocation4], 128, 128, 8
    $region29: #{tpu_custom_call.1} parent=1 // pred_fallthru
      _
    // Predicated region
    $region30: #{tpu_custom_call.1} parent=1 // pred_check
      _
    $region31: #{tpu_custom_call.1} parent=1 // pred_check_branch
      %264 = sbr.rel (0) target = $region33
    $region32: #{tpu_custom_call.1} parent=1 // pred_region
      %265 = dma.done [#allocation4], 256
    $region33: #{tpu_custom_call.1} parent=1 // pred_fallthru
      _
    %266 = vsyncpa [#allocation3], 1
    %267 = vsyncpa [#allocation6], 1
    %268 = vsyncpa [#allocation4], 1

</llo_original>
